<compile_context>
chip_gen: v7x
topology: tpu7x:2x2x1
jax: 0.10.0
libtpu: 0.0.40
codegen_flags: <defaults>
</compile_context>

<pallas_src>
import functools

import jax
import jax.numpy as jnp
from jax.experimental import pallas as pl
from jax.experimental.pallas import tpu as pltpu


def _round_up(x: int, m: int) -> int:
    return ((x + m - 1) // m) * m


def mlp_kernel(x_ref, wfc_ref, bfc_ref, wproj_ref, bproj_ref, o_ref):
    # x_ref:     (TM, Cp)  bf16        wfc_ref:   (Cp, Hp) bf16
    # bfc_ref:   (1, Hp)   f32         wproj_ref: (Hp, Cp) bf16
    # bproj_ref: (1, Cp)   f32         o_ref:     (TM, Cp) f32
    x = x_ref[...]
    # c_fc: bf16 operands on the MXU, fp32 accumulation.
    h = jnp.dot(x, wfc_ref[...], preferred_element_type=jnp.float32)
    # Bias broadcast once per tile; tanh goes to the EUP slot.
    h = jnp.tanh(h + bfc_ref[...])
    # c_proj: cast activations back to bf16 for the MXU, accumulate fp32.
    y = jnp.dot(h.astype(jnp.bfloat16), wproj_ref[...],
                preferred_element_type=jnp.float32)
    y = y + bproj_ref[...]
    # dropout: identity (eval mode)
    o_ref[...] = y.astype(o_ref.dtype)


def mlp_forward(x, w_fc, b_fc, w_proj, b_proj, *, tile_m: int = 512):
    """x: (B, T, C) float32. Weights stored (in_features, out_features).
    Returns (B, T, C) float32."""
    B, T, C = x.shape
    H = w_fc.shape[1]
    M = B * T

    # Lane-dense padding (multiples of 128 on the lane axis).
    Cp = _round_up(C, 128)
    Hp = _round_up(H, 128)

    # Row tile: multiple of 8 sublanes, capped at tile_m.
    tm = min(tile_m, _round_up(M, 8))
    tm = _round_up(tm, 8)
    n_tiles = pl.cdiv(M, tm)
    Mp = n_tiles * tm

    x2d = x.reshape(M, C)
    x2d = jnp.pad(x2d, ((0, Mp - M), (0, Cp - C))).astype(jnp.bfloat16)
    wfc = jnp.pad(w_fc, ((0, Cp - C), (0, Hp - H))).astype(jnp.bfloat16)
    wpr = jnp.pad(w_proj, ((0, Hp - H), (0, Cp - C))).astype(jnp.bfloat16)
    bfc = jnp.pad(b_fc, (0, Hp - H)).reshape(1, Hp).astype(jnp.float32)
    bpr = jnp.pad(b_proj, (0, Cp - C)).reshape(1, Cp).astype(jnp.float32)

    # Derive a VMEM budget from the actual footprint (double-buffered row
    # tiles + resident weights/biases + fp32 intermediates), with ~2x headroom,
    # clamped to a v7x-safe ceiling.
    resident = (Cp * Hp + Hp * Cp) * 2 + (Hp + Cp) * 4
    per_tile = 2 * (tm * Cp * 2) + 2 * (tm * Cp * 4) + tm * Hp * 4
    vmem_bytes = min(60 * 1024 * 1024,
                     max(8 * 1024 * 1024, 2 * (resident + per_tile)))

    cost = pl.CostEstimate(
        flops=2 * Mp * Cp * Hp + 2 * Mp * Hp * Cp,
        transcendentals=Mp * Hp,
        bytes_accessed=(x2d.size * 2 + wfc.size * 2 + wpr.size * 2
                        + bfc.size * 4 + bpr.size * 4 + Mp * Cp * 4),
    )

    out2d = pl.pallas_call(
        mlp_kernel,
        out_shape=jax.ShapeDtypeStruct((Mp, Cp), jnp.float32),
        grid=(n_tiles,),
        in_specs=[
            pl.BlockSpec((tm, Cp), lambda i: (i, 0)),   # streamed row tiles
            pl.BlockSpec((Cp, Hp), lambda i: (0, 0)),   # resident weights
            pl.BlockSpec((1, Hp), lambda i: (0, 0)),    # resident bias
            pl.BlockSpec((Hp, Cp), lambda i: (0, 0)),   # resident weights
            pl.BlockSpec((1, Cp), lambda i: (0, 0)),    # resident bias
        ],
        out_specs=pl.BlockSpec((tm, Cp), lambda i: (i, 0)),
        compiler_params=pltpu.CompilerParams(
            dimension_semantics=("parallel",),          # megacore on v7x
            vmem_limit_bytes=vmem_bytes,
        ),
        cost_estimate=cost,
    )(x2d, wfc, bfc, wpr, bpr)

    return out2d[:M, :C].reshape(B, T, C)


def init_params(key, n_embd):
    """Deterministic init mimicking nn.Linear: U(-1/sqrt(fan_in), 1/sqrt(fan_in)).
    Weights kept as (in_features, out_features)."""
    hidden = 4 * n_embd
    k1, k2, k3, k4 = jax.random.split(key, 4)
    bound_fc = 1.0 / (n_embd ** 0.5)
    bound_pr = 1.0 / (hidden ** 0.5)
    w_fc = jax.random.uniform(k1, (n_embd, hidden), jnp.float32,
                              minval=-bound_fc, maxval=bound_fc)
    b_fc = jax.random.uniform(k2, (hidden,), jnp.float32,
                              minval=-bound_fc, maxval=bound_fc)
    w_proj = jax.random.uniform(k3, (hidden, n_embd), jnp.float32,
                                minval=-bound_pr, maxval=bound_pr)
    b_proj = jax.random.uniform(k4, (n_embd,), jnp.float32,
                                minval=-bound_pr, maxval=bound_pr)
    return w_fc, b_fc, w_proj, b_proj


if __name__ == "__main__":
    # GPTConfig: n_embd=48 -> hidden=192. Small batch/seq for the demo.
    n_embd = 48
    B, T = 2, 8

    key = jax.random.PRNGKey(0)
    k_params, k_x = jax.random.split(key)
    w_fc, b_fc, w_proj, b_proj = init_params(k_params, n_embd)
    x = jax.random.normal(k_x, (B, T, n_embd), jnp.float32)

    fwd = jax.jit(functools.partial(mlp_forward, tile_m=512))
    out = fwd(x, w_fc, b_fc, w_proj, b_proj)
    out = jax.block_until_ready(out)

    # Reference with the same bf16-operand / fp32-accumulate matmul recipe.
    xb = x.reshape(-1, n_embd).astype(jnp.bfloat16)
    h_ref = jnp.dot(xb, w_fc.astype(jnp.bfloat16),
                    preferred_element_type=jnp.float32) + b_fc
    h_ref = jnp.tanh(h_ref)
    ref = jnp.dot(h_ref.astype(jnp.bfloat16), w_proj.astype(jnp.bfloat16),
                  preferred_element_type=jnp.float32) + b_proj
    ref = ref.reshape(B, T, n_embd)

    # Full-precision reference (coarser tolerance due to bf16 operands).
    ref_fp32 = jnp.tanh(x.reshape(-1, n_embd) @ w_fc + b_fc) @ w_proj + b_proj
    ref_fp32 = ref_fp32.reshape(B, T, n_embd)

    assert out.shape == (B, T, n_embd)
    assert jnp.allclose(out, ref, atol=1e-3, rtol=1e-3)
    assert jnp.allclose(out, ref_fp32, atol=3e-2, rtol=3e-2)

    print("KERNEL_OK")
</pallas_src>

<mosaic_0001>
module attributes {stable_mosaic.version = 11 : i64} {
  func.func @mlp_kernel(%arg0: i32, %arg1: memref<16x128xbf16, #tpu.memory_space<vmem>>, %arg2: memref<128x256xbf16, #tpu.memory_space<vmem>>, %arg3: memref<1x256xf32, #tpu.memory_space<vmem>>, %arg4: memref<256x128xbf16, #tpu.memory_space<vmem>>, %arg5: memref<1x128xf32, #tpu.memory_space<vmem>>, %arg6: memref<16x128xf32, #tpu.memory_space<vmem>>) attributes {dimension_semantics = [#tpu.dimension_semantics<parallel>], iteration_bounds = array<i64: 1>, scalar_prefetch = 0 : i64, scratch_operands = 0 : i64, tpu.core_type = #tpu.core_type<tc>, window_params = [{transform_indices = @transform_0, window_bounds = array<i64: 16, 128>}, {pipeline_mode = #tpu.pipeline_mode<synchronous>, transform_indices = @transform_1, window_bounds = array<i64: 128, 256>}, {pipeline_mode = #tpu.pipeline_mode<synchronous>, transform_indices = @transform_2, window_bounds = array<i64: 1, 256>}, {pipeline_mode = #tpu.pipeline_mode<synchronous>, transform_indices = @transform_3, window_bounds = array<i64: 256, 128>}, {pipeline_mode = #tpu.pipeline_mode<synchronous>, transform_indices = @transform_4, window_bounds = array<i64: 1, 128>}, {transform_indices = @transform_5, window_bounds = array<i64: 16, 128>}]} {
    %c0 = arith.constant 0 : index
    %c0_0 = arith.constant 0 : index
    %0 = vector.load %arg1[%c0, %c0_0] : memref<16x128xbf16, #tpu.memory_space<vmem>>, vector<16x128xbf16>
    %c0_1 = arith.constant 0 : index
    %c0_2 = arith.constant 0 : index
    %1 = vector.load %arg2[%c0_1, %c0_2] : memref<128x256xbf16, #tpu.memory_space<vmem>>, vector<128x256xbf16>
    %cst = arith.constant dense<0.000000e+00> : vector<16x256xf32>
    %2 = tpu.matmul %0, %1, %cst {dimension_numbers = #tpu.dot_dimension_numbers<[1], [0], [0], [1], [0, 0, 1, 1], [], []>} : vector<16x128xbf16>, vector<128x256xbf16>, vector<16x256xf32> -> vector<16x256xf32>
    %c0_3 = arith.constant 0 : index
    %c0_4 = arith.constant 0 : index
    %3 = vector.load %arg3[%c0_3, %c0_4] : memref<1x256xf32, #tpu.memory_space<vmem>>, vector<1x256xf32>
    %4 = vector.broadcast %3 : vector<1x256xf32> to vector<16x256xf32>
    %5 = arith.addf %2, %4 : vector<16x256xf32>
    %6 = math.tanh %5 : vector<16x256xf32>
    %7 = arith.truncf %6 : vector<16x256xf32> to vector<16x256xbf16>
    %c0_5 = arith.constant 0 : index
    %c0_6 = arith.constant 0 : index
    %8 = vector.load %arg4[%c0_5, %c0_6] : memref<256x128xbf16, #tpu.memory_space<vmem>>, vector<256x128xbf16>
    %cst_7 = arith.constant dense<0.000000e+00> : vector<16x128xf32>
    %9 = tpu.matmul %7, %8, %cst_7 {dimension_numbers = #tpu.dot_dimension_numbers<[1], [0], [0], [1], [0, 0, 1, 1], [], []>} : vector<16x256xbf16>, vector<256x128xbf16>, vector<16x128xf32> -> vector<16x128xf32>
    %c0_8 = arith.constant 0 : index
    %c0_9 = arith.constant 0 : index
    %10 = vector.load %arg5[%c0_8, %c0_9] : memref<1x128xf32, #tpu.memory_space<vmem>>, vector<1x128xf32>
    %11 = vector.broadcast %10 : vector<1x128xf32> to vector<16x128xf32>
    %12 = arith.addf %9, %11 : vector<16x128xf32>
    %c0_10 = arith.constant 0 : index
    %c0_11 = arith.constant 0 : index
    %13 = vector.load %arg6[%c0_10, %c0_11] : memref<16x128xf32, #tpu.memory_space<vmem>>, vector<16x128xf32>
    tpu.vector_store %arg6[%c0_10, %c0_11], %12 {strides = array<i32>} : memref<16x128xf32, #tpu.memory_space<vmem>>, vector<16x128xf32>,
    return
  }
  func.func @transform_0(%arg0: i32) -> (i32, i32) {
    %c0_i32 = arith.constant 0 : i32
    %c0_i32_0 = arith.constant 0 : i32
    return %arg0, %c0_i32 : i32, i32
  }
  func.func @transform_1(%arg0: i32) -> (i32, i32) {
    %c0_i32 = arith.constant 0 : i32
    %c0_i32_0 = arith.constant 0 : i32
    %c0_i32_1 = arith.constant 0 : i32
    return %c0_i32, %c0_i32_0 : i32, i32
  }
  func.func @transform_2(%arg0: i32) -> (i32, i32) {
    %c0_i32 = arith.constant 0 : i32
    %c0_i32_0 = arith.constant 0 : i32
    %c0_i32_1 = arith.constant 0 : i32
    return %c0_i32, %c0_i32_0 : i32, i32
  }
  func.func @transform_3(%arg0: i32) -> (i32, i32) {
    %c0_i32 = arith.constant 0 : i32
    %c0_i32_0 = arith.constant 0 : i32
    %c0_i32_1 = arith.constant 0 : i32
    return %c0_i32, %c0_i32_0 : i32, i32
  }
  func.func @transform_4(%arg0: i32) -> (i32, i32) {
    %c0_i32 = arith.constant 0 : i32
    %c0_i32_0 = arith.constant 0 : i32
    %c0_i32_1 = arith.constant 0 : i32
    return %c0_i32, %c0_i32_0 : i32, i32
  }
  func.func @transform_5(%arg0: i32) -> (i32, i32) {
    %c0_i32 = arith.constant 0 : i32
    %c0_i32_0 = arith.constant 0 : i32
    return %arg0, %c0_i32 : i32, i32
  }
}

</mosaic_0001>

<llo_original>
// kernel: mlp_forward.1
$region0: #{mlp_forward.1}
  #allocation0 [shape = 'u32[]', space=smem, size = 0x4, offset = 0x4, fixed_abs, tag = 'smem constant byte address 0x4 - core index']
  #allocation1 [shape = 'u32[144,128]{1,0:T(1,128)}', space=vmem, size = 0x12000, scoped, tag = 'internal scratch']
  %s0 = inlined_call_operand.vmem [shape: bf16[16,128], index: 0, kind: input, shape index: {}]
  %s1 = inlined_call_operand.vmem [shape: bf16[128,256], index: 1, kind: input, shape index: {}]
  %s2 = inlined_call_operand.vmem [shape: f32[1,256], index: 2, kind: input, shape index: {}]
  %s3 = inlined_call_operand.vmem [shape: bf16[256,128], index: 3, kind: input, shape index: {}]
  %s4 = inlined_call_operand.vmem [shape: f32[1,128], index: 4, kind: input, shape index: {}]
  %s5 = inlined_call_operand.vmem [shape: f32[16,128], index: 5, kind: output, shape index: {}]
  %s6 = sld [smem:[#allocation0]]
  $region30: #{mlp_forward.1} parent=0
    _
  %s8 = ssub.s32 1, %s6
  %s9 = scalar_select 0, %s8, %s6
  // Predicated region
  $region2: #{mlp_forward.1} parent=0 // pred_check
    _
  $region3: #{mlp_forward.1} parent=0 // pred_check_branch
    %11 = sbr.rel (0) target = $region5
  $region4: #{mlp_forward.1} parent=0 // pred_region
    _
  $region5: #{mlp_forward.1} parent=0 // pred_fallthru
    _
  // Predicated region
  $region6: #{mlp_forward.1} parent=0 // pred_check
    _
  $region7: #{mlp_forward.1} parent=0 // pred_check_branch
    %13 = sbr.rel (0) target = $region9
  $region8: #{mlp_forward.1} parent=0 // pred_region
    _
  $region9: #{mlp_forward.1} parent=0 // pred_fallthru
    _
  // Predicated region
  $region10: #{mlp_forward.1} parent=0 // pred_check
    _
  $region11: #{mlp_forward.1} parent=0 // pred_check_branch
    %15 = sbr.rel (0) target = $region13
  $region12: #{mlp_forward.1} parent=0 // pred_region
    _
  $region13: #{mlp_forward.1} parent=0 // pred_fallthru
    _
  // Predicated region
  $region14: #{mlp_forward.1} parent=0 // pred_check
    _
  $region15: #{mlp_forward.1} parent=0 // pred_check_branch
    %17 = sbr.rel (0) target = $region17
  $region16: #{mlp_forward.1} parent=0 // pred_region
    _
  $region17: #{mlp_forward.1} parent=0 // pred_fallthru
    _
  // Predicated region
  $region18: #{mlp_forward.1} parent=0 // pred_check
    _
  $region19: #{mlp_forward.1} parent=0 // pred_check_branch
    %19 = sbr.rel (0) target = $region21
  $region20: #{mlp_forward.1} parent=0 // pred_region
    _
  $region21: #{mlp_forward.1} parent=0 // pred_fallthru
    _
  %v21 = vld [vmem:[%s0] sm:$0xf]
  %v22 = vld [vmem:[%s0 + $0x4] sm:$0xf]
  %v23 = vld [vmem:[%s1] sm:$0xff]
  %v24 = vld [vmem:[%s1 + $0x8] sm:$0xff]
  %v25 = vld [vmem:[%s1 + $0x10] sm:$0xff]
  %v26 = vld [vmem:[%s1 + $0x18] sm:$0xff]
  %v27 = vld [vmem:[%s1 + $0x20] sm:$0xff]
  %v28 = vld [vmem:[%s1 + $0x28] sm:$0xff]
  %v29 = vld [vmem:[%s1 + $0x30] sm:$0xff]
  %v30 = vld [vmem:[%s1 + $0x38] sm:$0xff]
  %v31 = vld [vmem:[%s1 + $0x40] sm:$0xff]
  %v32 = vld [vmem:[%s1 + $0x48] sm:$0xff]
  %v33 = vld [vmem:[%s1 + $0x50] sm:$0xff]
  %v34 = vld [vmem:[%s1 + $0x58] sm:$0xff]
  %v35 = vld [vmem:[%s1 + $0x60] sm:$0xff]
  %v36 = vld [vmem:[%s1 + $0x68] sm:$0xff]
  %v37 = vld [vmem:[%s1 + $0x70] sm:$0xff]
  %v38 = vld [vmem:[%s1 + $0x78] sm:$0xff]
  %v39 = vld [vmem:[%s2] sm:$0x3]
  %v41 = vlaneseq
  %v42 = vshrl.u32 %v41, 7
  %v43 = vsub.s32 0, %v42
  %v44 = vrot.slane %v39, %v43
  %v45 = vlaneseq
  %v46 = vshrl.u32 %v45, 7
  %v47 = vsub.s32 1, %v46
  %v48 = vrot.slane %v39, %v47
  %v53 = vunpack.c.l.b16 %v21
  %v54 = vunpack.c.l.b16 %v22
  %v55 = vpack.c.b16 %v54, %v53
  %v73 = vunpack.c.l.b16 %v23
  %v74 = vunpack.c.h.b16 %v23
  %v75 = vunpack.c.l.b16 %v24
  %v76 = vunpack.c.h.b16 %v24
  %v77 = vunpack.c.l.b16 %v25
  %v78 = vunpack.c.h.b16 %v25
  %v79 = vunpack.c.l.b16 %v26
  %v80 = vunpack.c.h.b16 %v26
  %v81 = vunpack.c.l.b16 %v27
  %v82 = vunpack.c.h.b16 %v27
  %v83 = vunpack.c.l.b16 %v28
  %v84 = vunpack.c.h.b16 %v28
  %v85 = vunpack.c.l.b16 %v29
  %v86 = vunpack.c.h.b16 %v29
  %v87 = vunpack.c.l.b16 %v30
  %v88 = vunpack.c.h.b16 %v30
  %v89 = vunpack.c.l.b16 %v31
  %v90 = vunpack.c.h.b16 %v31
  %v91 = vunpack.c.l.b16 %v32
  %v92 = vunpack.c.h.b16 %v32
  %v93 = vunpack.c.l.b16 %v33
  %v94 = vunpack.c.h.b16 %v33
  %v95 = vunpack.c.l.b16 %v34
  %v96 = vunpack.c.h.b16 %v34
  %v97 = vunpack.c.l.b16 %v35
  %v98 = vunpack.c.h.b16 %v35
  %v99 = vunpack.c.l.b16 %v36
  %v100 = vunpack.c.h.b16 %v36
  %v101 = vunpack.c.l.b16 %v37
  %v102 = vunpack.c.h.b16 %v37
  %v103 = vunpack.c.l.b16 %v38
  %v104 = vunpack.c.h.b16 %v38
  %v105 = vpack.c.b16 %v75, %v73
  %v106 = vpack.c.b16 %v76, %v74
  %v107 = vpack.c.b16 %v79, %v77
  %v108 = vpack.c.b16 %v80, %v78
  %v109 = vpack.c.b16 %v83, %v81
  %v110 = vpack.c.b16 %v84, %v82
  %v111 = vpack.c.b16 %v87, %v85
  %v112 = vpack.c.b16 %v88, %v86
  %v113 = vpack.c.b16 %v91, %v89
  %v114 = vpack.c.b16 %v92, %v90
  %v115 = vpack.c.b16 %v95, %v93
  %v116 = vpack.c.b16 %v96, %v94
  %v117 = vpack.c.b16 %v99, %v97
  %v118 = vpack.c.b16 %v100, %v98
  %v119 = vpack.c.b16 %v103, %v101
  %v120 = vpack.c.b16 %v104, %v102
  %137 = vmatprep.subr.bf16.mxu0 %v106
  %138 = vmatpush1.bf16.msra.mxu0 %v105
  %139 = vmatprep.subr.bf16.mxu0 %v108
  %140 = vmatpush1.bf16.msra.mxu0 %v107
  %141 = vmatprep.subr.bf16.mxu0 %v110
  %142 = vmatpush1.bf16.msra.mxu0 %v109
  %143 = vmatprep.subr.bf16.mxu0 %v112
  %144 = vmatpush1.bf16.msra.mxu0 %v111
  %145 = vmatprep.subr.bf16.mxu0 %v114
  %146 = vmatpush1.bf16.msra.mxu0 %v113
  %147 = vmatprep.subr.bf16.mxu0 %v116
  %148 = vmatpush1.bf16.msra.mxu0 %v115
  %149 = vmatprep.subr.bf16.mxu0 %v118
  %150 = vmatpush1.bf16.msra.mxu0 %v117
  %151 = vmatprep.subr.bf16.mxu0 %v120
  %152 = vmatpush1.bf16.msra.mxu0 %v119
  %153 = vmatprep.subr.bf16.mxu0 0
  %154 = vmatpush1.bf16.msra.mxu0 0
  %155 = vmatprep.subr.bf16.mxu0 0
  %156 = vmatpush1.bf16.msra.mxu0 0
  %157 = vmatprep.subr.bf16.mxu0 0
  %158 = vmatpush1.bf16.msra.mxu0 0
  %159 = vmatprep.subr.bf16.mxu0 0
  %160 = vmatpush1.bf16.msra.mxu0 0
  %161 = vmatprep.subr.bf16.mxu0 0
  %162 = vmatpush1.bf16.msra.mxu0 0
  %163 = vmatprep.subr.bf16.mxu0 0
  %164 = vmatpush1.bf16.msra.mxu0 0
  %165 = vmatprep.subr.bf16.mxu0 0
  %166 = vmatpush1.bf16.msra.mxu0 0
  %167 = vmatprep.subr.bf16.mxu0 0
  %168 = vmatpush1.bf16.msra.mxu0 0
  %169 = vmatprep.mubr.bf16.mxu0 0
  %170 = vmatmul.mubr.bf16.gmra.mrb[0].mxu0 %v55
  %v171 = vpop.f32.mrb[0].mxu0
  %v172 = vadd.f32 %v44, %v171
  %v173 = vpop.f32.mrb[0].mxu0
  %v174 = vadd.f32 %v48, %v173
  %v175 = vpop.f32.mrb[0].mxu0
  %v176 = vadd.f32 %v44, %v175
  %v177 = vpop.f32.mrb[0].mxu0
  %v178 = vadd.f32 %v48, %v177
  %179 = vdwg.mxu0
  %v180 = vtanh.pop %v172
  %v181 = vtanh.pop %v174
  %v182 = vtanh.pop %v176
  %v183 = vtanh.pop %v178
  %v184 = vpack.c.bf16 %v182, %v180
  %v185 = vpack.c.bf16 %v183, %v181
  %v186 = vld [vmem:[%s3] sm:$0xf]
  %v187 = vld [vmem:[%s3 + $0x4] sm:$0xf]
  %v188 = vld [vmem:[%s3 + $0x8] sm:$0xf]
  %v189 = vld [vmem:[%s3 + $0xc] sm:$0xf]
  %v190 = vld [vmem:[%s3 + $0x10] sm:$0xf]
  %v191 = vld [vmem:[%s3 + $0x14] sm:$0xf]
  %v192 = vld [vmem:[%s3 + $0x18] sm:$0xf]
  %v193 = vld [vmem:[%s3 + $0x1c] sm:$0xf]
  %v194 = vld [vmem:[%s3 + $0x20] sm:$0xf]
  %v195 = vld [vmem:[%s3 + $0x24] sm:$0xf]
  %v196 = vld [vmem:[%s3 + $0x28] sm:$0xf]
  %v197 = vld [vmem:[%s3 + $0x2c] sm:$0xf]
  %v198 = vld [vmem:[%s3 + $0x30] sm:$0xf]
  %v199 = vld [vmem:[%s3 + $0x34] sm:$0xf]
  %v200 = vld [vmem:[%s3 + $0x38] sm:$0xf]
  %v201 = vld [vmem:[%s3 + $0x3c] sm:$0xf]
  %v202 = vld [vmem:[%s3 + $0x40] sm:$0xf]
  %v203 = vld [vmem:[%s3 + $0x44] sm:$0xf]
  %v204 = vld [vmem:[%s3 + $0x48] sm:$0xf]
  %v205 = vld [vmem:[%s3 + $0x4c] sm:$0xf]
  %v206 = vld [vmem:[%s3 + $0x50] sm:$0xf]
  %v207 = vld [vmem:[%s3 + $0x54] sm:$0xf]
  %v208 = vld [vmem:[%s3 + $0x58] sm:$0xf]
  %v209 = vld [vmem:[%s3 + $0x5c] sm:$0xf]
  %v210 = vld [vmem:[%s3 + $0x60] sm:$0xf]
  %v211 = vld [vmem:[%s3 + $0x64] sm:$0xf]
  %v212 = vld [vmem:[%s3 + $0x68] sm:$0xf]
  %v213 = vld [vmem:[%s3 + $0x6c] sm:$0xf]
  %v214 = vld [vmem:[%s3 + $0x70] sm:$0xf]
  %v215 = vld [vmem:[%s3 + $0x74] sm:$0xf]
  %v216 = vld [vmem:[%s3 + $0x78] sm:$0xf]
  %v217 = vld [vmem:[%s3 + $0x7c] sm:$0xf]
  %v218 = vld [vmem:[%s4] sm:$0x1]
  %v220 = vlaneseq
  %v221 = vshrl.u32 %v220, 7
  %v222 = vsub.s32 0, %v221
  %v223 = vrot.slane %v218, %v222
  %v257 = vunpack.c.l.b16 %v186
  %v258 = vunpack.c.l.b16 %v187
  %v259 = vunpack.c.l.b16 %v188
  %v260 = vunpack.c.l.b16 %v189
  %v261 = vunpack.c.l.b16 %v190
  %v262 = vunpack.c.l.b16 %v191
  %v263 = vunpack.c.l.b16 %v192
  %v264 = vunpack.c.l.b16 %v193
  %v265 = vunpack.c.l.b16 %v194
  %v266 = vunpack.c.l.b16 %v195
  %v267 = vunpack.c.l.b16 %v196
  %v268 = vunpack.c.l.b16 %v197
  %v269 = vunpack.c.l.b16 %v198
  %v270 = vunpack.c.l.b16 %v199
  %v271 = vunpack.c.l.b16 %v200
  %v272 = vunpack.c.l.b16 %v201
  %v273 = vunpack.c.l.b16 %v202
  %v274 = vunpack.c.l.b16 %v203
  %v275 = vunpack.c.l.b16 %v204
  %v276 = vunpack.c.l.b16 %v205
  %v277 = vunpack.c.l.b16 %v206
  %v278 = vunpack.c.l.b16 %v207
  %v279 = vunpack.c.l.b16 %v208
  %v280 = vunpack.c.l.b16 %v209
  %v281 = vunpack.c.l.b16 %v210
  %v282 = vunpack.c.l.b16 %v211
  %v283 = vunpack.c.l.b16 %v212
  %v284 = vunpack.c.l.b16 %v213
  %v285 = vunpack.c.l.b16 %v214
  %v286 = vunpack.c.l.b16 %v215
  %v287 = vunpack.c.l.b16 %v216
  %v288 = vunpack.c.l.b16 %v217
  %v289 = vpack.c.b16 %v258, %v257
  %v290 = vpack.c.b16 %v260, %v259
  %v291 = vpack.c.b16 %v262, %v261
  %v292 = vpack.c.b16 %v264, %v263
  %v293 = vpack.c.b16 %v266, %v265
  %v294 = vpack.c.b16 %v268, %v267
  %v295 = vpack.c.b16 %v270, %v269
  %v296 = vpack.c.b16 %v272, %v271
  %v297 = vpack.c.b16 %v274, %v273
  %v298 = vpack.c.b16 %v276, %v275
  %v299 = vpack.c.b16 %v278, %v277
  %v300 = vpack.c.b16 %v280, %v279
  %v301 = vpack.c.b16 %v282, %v281
  %v302 = vpack.c.b16 %v284, %v283
  %v303 = vpack.c.b16 %v286, %v285
  %v304 = vpack.c.b16 %v288, %v287
  %321 = vmatprep.subr.bf16.mxu0 0
  %322 = vmatpush1.bf16.msra.mxu0 %v289
  %323 = vmatprep.subr.bf16.mxu0 0
  %324 = vmatpush1.bf16.msra.mxu0 %v290
  %325 = vmatprep.subr.bf16.mxu0 0
  %326 = vmatpush1.bf16.msra.mxu0 %v291
  %327 = vmatprep.subr.bf16.mxu0 0
  %328 = vmatpush1.bf16.msra.mxu0 %v292
  %329 = vmatprep.subr.bf16.mxu0 0
  %330 = vmatpush1.bf16.msra.mxu0 %v293
  %331 = vmatprep.subr.bf16.mxu0 0
  %332 = vmatpush1.bf16.msra.mxu0 %v294
  %333 = vmatprep.subr.bf16.mxu0 0
  %334 = vmatpush1.bf16.msra.mxu0 %v295
  %335 = vmatprep.subr.bf16.mxu0 0
  %336 = vmatpush1.bf16.msra.mxu0 %v296
  %337 = vmatprep.subr.bf16.mxu0 0
  %338 = vmatpush1.bf16.msra.mxu0 %v297
  %339 = vmatprep.subr.bf16.mxu0 0
  %340 = vmatpush1.bf16.msra.mxu0 %v298
  %341 = vmatprep.subr.bf16.mxu0 0
  %342 = vmatpush1.bf16.msra.mxu0 %v299
  %343 = vmatprep.subr.bf16.mxu0 0
  %344 = vmatpush1.bf16.msra.mxu0 %v300
  %345 = vmatprep.subr.bf16.mxu0 0
  %346 = vmatpush1.bf16.msra.mxu0 %v301
  %347 = vmatprep.subr.bf16.mxu0 0
  %348 = vmatpush1.bf16.msra.mxu0 %v302
  %349 = vmatprep.subr.bf16.mxu0 0
  %350 = vmatpush1.bf16.msra.mxu0 %v303
  %351 = vmatprep.subr.bf16.mxu0 0
  %352 = vmatpush1.bf16.msra.mxu0 %v304
  %353 = vmatprep.mubr.bf16.mxu0 %v185
  %354 = vmatmul.mubr.bf16.gmra.mrb[0].mxu0 %v184
  %v355 = vpop.f32.mrb[0].mxu0
  %v356 = vadd.f32 %v223, %v355
  %v357 = vpop.f32.mrb[0].mxu0
  %v358 = vpop.f32.mrb[0].mxu0
  %v359 = vadd.f32 %v223, %v358
  %v360 = vpop.f32.mrb[0].mxu0
  %361 = vdwg.mxu0
  %362 = vst [vmem:[%s5] sm:$0xff] %v356
  %363 = vst [vmem:[%s5 + $0x8] sm:$0xff] %v359
  // Predicated region
  $region22: #{mlp_forward.1} parent=0 // pred_check
    _
  $region23: #{mlp_forward.1} parent=0 // pred_check_branch
    %365 = sbr.rel (0) target = $region25
  $region24: #{mlp_forward.1} parent=0 // pred_region
    _
  $region25: #{mlp_forward.1} parent=0 // pred_fallthru
    _
  // Predicated region
  $region26: #{mlp_forward.1} parent=0 // pred_check
    _
  $region27: #{mlp_forward.1} parent=0 // pred_check_branch
    %367 = sbr.rel (0) target = $region29
  $region28: #{mlp_forward.1} parent=0 // pred_region
    _
  $region29: #{mlp_forward.1} parent=0 // pred_fallthru
    _

</llo_original>
